<compile_context>
chip_gen: v5e
topology: v5e:2x2
jax: 0.10.0
libtpu: 0.0.40
codegen_flags: <defaults>
</compile_context>

<pallas_src>
import math
import jax
import jax.numpy as jnp
from jax.experimental import pallas as pl
from jax.experimental.pallas import tpu as pltpu

# ---- config (small, consistent with the module) ----
BATCH = 2
SEQ = 8
HIDDEN = 32
NUM_HEADS = 4
HEAD_SIZE = HIDDEN // NUM_HEADS  # 8
# TODO(synk): nn.Dropout on attention_probs is identity in eval mode; we model eval mode.


def _make_self_attention_kernel(batch, seq, hidden, num_heads):
    head = hidden // num_heads
    inv_sqrt_d = 1.0 / math.sqrt(head)

    def kernel(x_ref, mask_ref, wqkv_ref, bqkv_ref, out_ref):
        # x_ref:    (B*S, H)   all batch rows folded onto sublanes
        # mask_ref: (B, S)     additive mask (0 / -10000)
        # wqkv_ref: (H, 3H)    fused, pre-transposed [in, out] Q|K|V weights
        # bqkv_ref: (1, 3H)    fused Q|K|V bias
        # out_ref:  (B*S, H)
        x = x_ref[...]                                             # (B*S, H)

        # One fused MXU pass for all three projections over all batch rows.
        qkv = (jnp.dot(x, wqkv_ref[...], preferred_element_type=jnp.float32)
               + bqkv_ref[...])                                    # (B*S, 3H)
        mask = mask_ref[...]                                       # (B, S)

        for b in range(batch):                                     # static loops
            r0 = b * seq
            mask_b = mask[b:b + 1, :]                              # (1, S)
            for h in range(num_heads):
                c0 = h * head
                qh = qkv[r0:r0 + seq, c0:c0 + head]                         # (S, d)
                kh = qkv[r0:r0 + seq, hidden + c0:hidden + c0 + head]       # (S, d)
                vh = qkv[r0:r0 + seq, 2 * hidden + c0:2 * hidden + c0 + head]

                s = jnp.dot(qh, kh.T, preferred_element_type=jnp.float32)   # (S, S)
                s = s * inv_sqrt_d + mask_b    # mask after 1/sqrt(d), as in reference

                # numerically-stable softmax along keys
                s = s - jnp.max(s, axis=-1, keepdims=True)
                p = jnp.exp(s)
                p = p * pl.reciprocal(jnp.sum(p, axis=-1, keepdims=True),
                                      approx=True)

                # permute(0,2,1,3) + view  ==  each head's context goes into its
                # own column block of the output; store it directly (no concat).
                out_ref[r0:r0 + seq, c0:c0 + head] = jnp.dot(
                    p, vh, preferred_element_type=jnp.float32)

    return kernel


def prepare_qkv_params(wq, bq, wk, bk, wv, bv):
    """One-time parameter prep: PyTorch (out, in) Linears -> fused (H, 3H) + (1, 3H)."""
    w_qkv = jnp.concatenate([wq.T, wk.T, wv.T], axis=1)            # (H, 3H)
    b_qkv = jnp.concatenate([bq, bk, bv]).reshape(1, -1)           # (1, 3H)
    return w_qkv, b_qkv


def bert_self_attention(hidden_states, attention_mask, fused_params,
                        num_heads=NUM_HEADS):
    """hidden_states: (B, S, H) f32; attention_mask: (B, 1, 1, S) f32."""
    B, S, H = hidden_states.shape
    w_qkv, b_qkv = fused_params

    x2d = hidden_states.reshape(B * S, H)     # fold batch into rows (wrapper side)
    mask2d = attention_mask.reshape(B, S)     # clean (sublane, lane) mask layout

    kernel = _make_self_attention_kernel(B, S, H, num_heads)

    def vmem_spec():
        return pl.BlockSpec(memory_space=pltpu.MemorySpace.VMEM)

    out2d = pl.pallas_call(
        kernel,
        out_shape=jax.ShapeDtypeStruct((B * S, H), jnp.float32),
        in_specs=[vmem_spec(), vmem_spec(), vmem_spec(), vmem_spec()],
        out_specs=vmem_spec(),
    )(x2d, mask2d, w_qkv, b_qkv)

    return out2d.reshape(B, S, H)


def _reference(hidden_states, attention_mask, params):
    """Pure-JAX reference mirroring the PyTorch forward exactly."""
    wq, bq, wk, bk, wv, bv = params
    B, S, H = hidden_states.shape
    d = H // NUM_HEADS

    def split_heads(x):
        return x.reshape(B, S, NUM_HEADS, d).transpose(0, 2, 1, 3)

    q = split_heads(hidden_states @ wq.T + bq)
    k = split_heads(hidden_states @ wk.T + bk)
    v = split_heads(hidden_states @ wv.T + bv)

    scores = jnp.einsum("bhqd,bhkd->bhqk", q, k) / math.sqrt(d)
    scores = scores + attention_mask               # (B,1,1,S) broadcasts
    probs = jax.nn.softmax(scores, axis=-1)
    ctx = jnp.einsum("bhqk,bhkd->bhqd", probs, v)
    return ctx.transpose(0, 2, 1, 3).reshape(B, S, H)


if __name__ == "__main__":
    key = jax.random.PRNGKey(0)
    k_x, k_wq, k_bq, k_wk, k_bk, k_wv, k_bv, k_m = jax.random.split(key, 8)

    hidden_states = jax.random.normal(k_x, (BATCH, SEQ, HIDDEN), jnp.float32)

    # Deterministic parameter init (PyTorch Linear layout: W is (out, in)).
    wq = jax.random.normal(k_wq, (HIDDEN, HIDDEN), jnp.float32) * 0.02
    bq = jax.random.normal(k_bq, (HIDDEN,), jnp.float32) * 0.02
    wk = jax.random.normal(k_wk, (HIDDEN, HIDDEN), jnp.float32) * 0.02
    bk = jax.random.normal(k_bk, (HIDDEN,), jnp.float32) * 0.02
    wv = jax.random.normal(k_wv, (HIDDEN, HIDDEN), jnp.float32) * 0.02
    bv = jax.random.normal(k_bv, (HIDDEN,), jnp.float32) * 0.02
    params = (wq, bq, wk, bk, wv, bv)

    # One-time fused QKV parameter prep (kept off the per-call path).
    fused_params = prepare_qkv_params(*params)

    # Standard BERT additive mask: 0 for attend, -10000 for padded positions.
    pad = (jax.random.uniform(k_m, (BATCH, SEQ)) > 0.8).astype(jnp.float32)
    attention_mask = (pad * -10000.0).reshape(BATCH, 1, 1, SEQ)

    out = bert_self_attention(hidden_states, attention_mask, fused_params)
    out = jax.block_until_ready(out)

    ref = _reference(hidden_states, attention_mask, params)
    assert out.shape == (BATCH, SEQ, HIDDEN)
    # Tolerance accounts for the approximate (EUP) reciprocal in the softmax.
    assert jnp.allclose(out, ref, atol=2e-3, rtol=2e-3), "mismatch vs reference"

    print("KERNEL_OK")
</pallas_src>

<mosaic_0001>
module attributes {stable_mosaic.version = 11 : i64} {
  func.func @kernel(%arg0: memref<16x32xf32, #tpu.memory_space<vmem>>, %arg1: memref<2x8xf32, #tpu.memory_space<vmem>>, %arg2: memref<32x96xf32, #tpu.memory_space<vmem>>, %arg3: memref<1x96xf32, #tpu.memory_space<vmem>>, %arg4: memref<16x32xf32, #tpu.memory_space<vmem>>) attributes {dimension_semantics = [], scalar_prefetch = 0 : i64, scratch_operands = 0 : i64, tpu.core_type = #tpu.core_type<tc>} {
    %c0 = arith.constant 0 : index
    %c0_0 = arith.constant 0 : index
    %0 = vector.load %arg0[%c0, %c0_0] : memref<16x32xf32, #tpu.memory_space<vmem>>, vector<16x32xf32>
    %c0_1 = arith.constant 0 : index
    %c0_2 = arith.constant 0 : index
    %1 = vector.load %arg2[%c0_1, %c0_2] : memref<32x96xf32, #tpu.memory_space<vmem>>, vector<32x96xf32>
    %cst = arith.constant dense<0.000000e+00> : vector<16x96xf32>
    %2 = tpu.matmul %0, %1, %cst {dimension_numbers = #tpu.dot_dimension_numbers<[1], [0], [0], [1], [0, 0, 1, 1], [], []>} : vector<16x32xf32>, vector<32x96xf32>, vector<16x96xf32> -> vector<16x96xf32>
    %c0_3 = arith.constant 0 : index
    %c0_4 = arith.constant 0 : index
    %3 = vector.load %arg3[%c0_3, %c0_4] : memref<1x96xf32, #tpu.memory_space<vmem>>, vector<1x96xf32>
    %4 = vector.broadcast %3 : vector<1x96xf32> to vector<16x96xf32>
    %5 = arith.addf %2, %4 : vector<16x96xf32>
    %c0_5 = arith.constant 0 : index
    %c0_6 = arith.constant 0 : index
    %6 = vector.load %arg1[%c0_5, %c0_6] : memref<2x8xf32, #tpu.memory_space<vmem>>, vector<2x8xf32>
    %7 = vector.extract_strided_slice %6 {offsets = [0, 0], sizes = [1, 8], strides = [1, 1]} : vector<2x8xf32> to vector<1x8xf32>
    %8 = vector.extract_strided_slice %5 {offsets = [0, 0], sizes = [8, 8], strides = [1, 1]} : vector<16x96xf32> to vector<8x8xf32>
    %9 = vector.extract_strided_slice %5 {offsets = [0, 32], sizes = [8, 8], strides = [1, 1]} : vector<16x96xf32> to vector<8x8xf32>
    %10 = vector.extract_strided_slice %5 {offsets = [0, 64], sizes = [8, 8], strides = [1, 1]} : vector<16x96xf32> to vector<8x8xf32>
    %11 = tpu.transpose %9, [1, 0] : vector<8x8xf32> -> vector<8x8xf32>
    %cst_7 = arith.constant dense<0.000000e+00> : vector<8x8xf32>
    %12 = tpu.matmul %8, %11, %cst_7 {dimension_numbers = #tpu.dot_dimension_numbers<[1], [0], [0], [1], [0, 0, 1, 1], [], []>} : vector<8x8xf32>, vector<8x8xf32>, vector<8x8xf32> -> vector<8x8xf32>
    %cst_8 = arith.constant 0.353553385 : f32
    %13 = vector.broadcast %cst_8 : f32 to vector<8x8xf32>
    %14 = arith.mulf %12, %13 : vector<8x8xf32>
    %15 = vector.broadcast %7 : vector<1x8xf32> to vector<8x8xf32>
    %16 = arith.addf %14, %15 : vector<8x8xf32>
    %cst_9 = arith.constant dense<0xFF800000> : vector<8xf32>
    %17 = vector.multi_reduction <maximumf>, %16, %cst_9 [1] : vector<8x8xf32> to vector<8xf32>
    %18 = vector.shape_cast %17 : vector<8xf32> to vector<8x1xf32>
    %19 = vector.broadcast %18 : vector<8x1xf32> to vector<8x8xf32>
    %20 = arith.subf %16, %19 : vector<8x8xf32>
    %21 = math.exp %20 : vector<8x8xf32>
    %cst_10 = arith.constant dense<0.000000e+00> : vector<8xf32>
    %22 = vector.multi_reduction <add>, %21, %cst_10 [1] : vector<8x8xf32> to vector<8xf32>
    %23 = vector.shape_cast %22 : vector<8xf32> to vector<8x1xf32>
    %24 = tpu.reciprocal %23 {approx = true} : vector<8x1xf32> -> vector<8x1xf32>
    %25 = vector.broadcast %24 : vector<8x1xf32> to vector<8x8xf32>
    %26 = arith.mulf %21, %25 : vector<8x8xf32>
    %cst_11 = arith.constant dense<0.000000e+00> : vector<8x8xf32>
    %27 = tpu.matmul %26, %10, %cst_11 {dimension_numbers = #tpu.dot_dimension_numbers<[1], [0], [0], [1], [0, 0, 1, 1], [], []>} : vector<8x8xf32>, vector<8x8xf32>, vector<8x8xf32> -> vector<8x8xf32>
    %c0_12 = arith.constant 0 : index
    %c0_13 = arith.constant 0 : index
    %28 = vector.load %arg4[%c0_12, %c0_13] : memref<16x32xf32, #tpu.memory_space<vmem>>, vector<8x8xf32>
    tpu.vector_store %arg4[%c0_12, %c0_13], %27 {strides = array<i32>} : memref<16x32xf32, #tpu.memory_space<vmem>>, vector<8x8xf32>,
    %29 = vector.extract_strided_slice %5 {offsets = [0, 8], sizes = [8, 8], strides = [1, 1]} : vector<16x96xf32> to vector<8x8xf32>
    %30 = vector.extract_strided_slice %5 {offsets = [0, 40], sizes = [8, 8], strides = [1, 1]} : vector<16x96xf32> to vector<8x8xf32>
    %31 = vector.extract_strided_slice %5 {offsets = [0, 72], sizes = [8, 8], strides = [1, 1]} : vector<16x96xf32> to vector<8x8xf32>
    %32 = tpu.transpose %30, [1, 0] : vector<8x8xf32> -> vector<8x8xf32>
    %cst_14 = arith.constant dense<0.000000e+00> : vector<8x8xf32>
    %33 = tpu.matmul %29, %32, %cst_14 {dimension_numbers = #tpu.dot_dimension_numbers<[1], [0], [0], [1], [0, 0, 1, 1], [], []>} : vector<8x8xf32>, vector<8x8xf32>, vector<8x8xf32> -> vector<8x8xf32>
    %cst_15 = arith.constant 0.353553385 : f32
    %34 = vector.broadcast %cst_15 : f32 to vector<8x8xf32>
    %35 = arith.mulf %33, %34 : vector<8x8xf32>
    %36 = vector.broadcast %7 : vector<1x8xf32> to vector<8x8xf32>
    %37 = arith.addf %35, %36 : vector<8x8xf32>
    %cst_16 = arith.constant dense<0xFF800000> : vector<8xf32>
    %38 = vector.multi_reduction <maximumf>, %37, %cst_16 [1] : vector<8x8xf32> to vector<8xf32>
    %39 = vector.shape_cast %38 : vector<8xf32> to vector<8x1xf32>
    %40 = vector.broadcast %39 : vector<8x1xf32> to vector<8x8xf32>
    %41 = arith.subf %37, %40 : vector<8x8xf32>
    %42 = math.exp %41 : vector<8x8xf32>
    %cst_17 = arith.constant dense<0.000000e+00> : vector<8xf32>
    %43 = vector.multi_reduction <add>, %42, %cst_17 [1] : vector<8x8xf32> to vector<8xf32>
    %44 = vector.shape_cast %43 : vector<8xf32> to vector<8x1xf32>
    %45 = tpu.reciprocal %44 {approx = true} : vector<8x1xf32> -> vector<8x1xf32>
    %46 = vector.broadcast %45 : vector<8x1xf32> to vector<8x8xf32>
    %47 = arith.mulf %42, %46 : vector<8x8xf32>
    %cst_18 = arith.constant dense<0.000000e+00> : vector<8x8xf32>
    %48 = tpu.matmul %47, %31, %cst_18 {dimension_numbers = #tpu.dot_dimension_numbers<[1], [0], [0], [1], [0, 0, 1, 1], [], []>} : vector<8x8xf32>, vector<8x8xf32>, vector<8x8xf32> -> vector<8x8xf32>
    %c0_19 = arith.constant 0 : index
    %c8 = arith.constant 8 : index
    %49 = vector.load %arg4[%c0_19, %c8] : memref<16x32xf32, #tpu.memory_space<vmem>>, vector<8x8xf32>
    tpu.vector_store %arg4[%c0_19, %c8], %48 {strides = array<i32>} : memref<16x32xf32, #tpu.memory_space<vmem>>, vector<8x8xf32>,
    %50 = vector.extract_strided_slice %5 {offsets = [0, 16], sizes = [8, 8], strides = [1, 1]} : vector<16x96xf32> to vector<8x8xf32>
    %51 = vector.extract_strided_slice %5 {offsets = [0, 48], sizes = [8, 8], strides = [1, 1]} : vector<16x96xf32> to vector<8x8xf32>
    %52 = vector.extract_strided_slice %5 {offsets = [0, 80], sizes = [8, 8], strides = [1, 1]} : vector<16x96xf32> to vector<8x8xf32>
    %53 = tpu.transpose %51, [1, 0] : vector<8x8xf32> -> vector<8x8xf32>
    %cst_20 = arith.constant dense<0.000000e+00> : vector<8x8xf32>
    %54 = tpu.matmul %50, %53, %cst_20 {dimension_numbers = #tpu.dot_dimension_numbers<[1], [0], [0], [1], [0, 0, 1, 1], [], []>} : vector<8x8xf32>, vector<8x8xf32>, vector<8x8xf32> -> vector<8x8xf32>
    %cst_21 = arith.constant 0.353553385 : f32
    %55 = vector.broadcast %cst_21 : f32 to vector<8x8xf32>
    %56 = arith.mulf %54, %55 : vector<8x8xf32>
    %57 = vector.broadcast %7 : vector<1x8xf32> to vector<8x8xf32>
    %58 = arith.addf %56, %57 : vector<8x8xf32>
    %cst_22 = arith.constant dense<0xFF800000> : vector<8xf32>
    %59 = vector.multi_reduction <maximumf>, %58, %cst_22 [1] : vector<8x8xf32> to vector<8xf32>
    %60 = vector.shape_cast %59 : vector<8xf32> to vector<8x1xf32>
    %61 = vector.broadcast %60 : vector<8x1xf32> to vector<8x8xf32>
    %62 = arith.subf %58, %61 : vector<8x8xf32>
    %63 = math.exp %62 : vector<8x8xf32>
    %cst_23 = arith.constant dense<0.000000e+00> : vector<8xf32>
    %64 = vector.multi_reduction <add>, %63, %cst_23 [1] : vector<8x8xf32> to vector<8xf32>
    %65 = vector.shape_cast %64 : vector<8xf32> to vector<8x1xf32>
    %66 = tpu.reciprocal %65 {approx = true} : vector<8x1xf32> -> vector<8x1xf32>
    %67 = vector.broadcast %66 : vector<8x1xf32> to vector<8x8xf32>
    %68 = arith.mulf %63, %67 : vector<8x8xf32>
    %cst_24 = arith.constant dense<0.000000e+00> : vector<8x8xf32>
    %69 = tpu.matmul %68, %52, %cst_24 {dimension_numbers = #tpu.dot_dimension_numbers<[1], [0], [0], [1], [0, 0, 1, 1], [], []>} : vector<8x8xf32>, vector<8x8xf32>, vector<8x8xf32> -> vector<8x8xf32>
    %c0_25 = arith.constant 0 : index
    %c16 = arith.constant 16 : index
    %70 = vector.load %arg4[%c0_25, %c16] : memref<16x32xf32, #tpu.memory_space<vmem>>, vector<8x8xf32>
    tpu.vector_store %arg4[%c0_25, %c16], %69 {strides = array<i32>} : memref<16x32xf32, #tpu.memory_space<vmem>>, vector<8x8xf32>,
    %71 = vector.extract_strided_slice %5 {offsets = [0, 24], sizes = [8, 8], strides = [1, 1]} : vector<16x96xf32> to vector<8x8xf32>
    %72 = vector.extract_strided_slice %5 {offsets = [0, 56], sizes = [8, 8], strides = [1, 1]} : vector<16x96xf32> to vector<8x8xf32>
    %73 = vector.extract_strided_slice %5 {offsets = [0, 88], sizes = [8, 8], strides = [1, 1]} : vector<16x96xf32> to vector<8x8xf32>
    %74 = tpu.transpose %72, [1, 0] : vector<8x8xf32> -> vector<8x8xf32>
    %cst_26 = arith.constant dense<0.000000e+00> : vector<8x8xf32>
    %75 = tpu.matmul %71, %74, %cst_26 {dimension_numbers = #tpu.dot_dimension_numbers<[1], [0], [0], [1], [0, 0, 1, 1], [], []>} : vector<8x8xf32>, vector<8x8xf32>, vector<8x8xf32> -> vector<8x8xf32>
    %cst_27 = arith.constant 0.353553385 : f32
    %76 = vector.broadcast %cst_27 : f32 to vector<8x8xf32>
    %77 = arith.mulf %75, %76 : vector<8x8xf32>
    %78 = vector.broadcast %7 : vector<1x8xf32> to vector<8x8xf32>
    %79 = arith.addf %77, %78 : vector<8x8xf32>
    %cst_28 = arith.constant dense<0xFF800000> : vector<8xf32>
    %80 = vector.multi_reduction <maximumf>, %79, %cst_28 [1] : vector<8x8xf32> to vector<8xf32>
    %81 = vector.shape_cast %80 : vector<8xf32> to vector<8x1xf32>
    %82 = vector.broadcast %81 : vector<8x1xf32> to vector<8x8xf32>
    %83 = arith.subf %79, %82 : vector<8x8xf32>
    %84 = math.exp %83 : vector<8x8xf32>
    %cst_29 = arith.constant dense<0.000000e+00> : vector<8xf32>
    %85 = vector.multi_reduction <add>, %84, %cst_29 [1] : vector<8x8xf32> to vector<8xf32>
    %86 = vector.shape_cast %85 : vector<8xf32> to vector<8x1xf32>
    %87 = tpu.reciprocal %86 {approx = true} : vector<8x1xf32> -> vector<8x1xf32>
    %88 = vector.broadcast %87 : vector<8x1xf32> to vector<8x8xf32>
    %89 = arith.mulf %84, %88 : vector<8x8xf32>
    %cst_30 = arith.constant dense<0.000000e+00> : vector<8x8xf32>
    %90 = tpu.matmul %89, %73, %cst_30 {dimension_numbers = #tpu.dot_dimension_numbers<[1], [0], [0], [1], [0, 0, 1, 1], [], []>} : vector<8x8xf32>, vector<8x8xf32>, vector<8x8xf32> -> vector<8x8xf32>
    %c0_31 = arith.constant 0 : index
    %c24 = arith.constant 24 : index
    %91 = vector.load %arg4[%c0_31, %c24] : memref<16x32xf32, #tpu.memory_space<vmem>>, vector<8x8xf32>
    tpu.vector_store %arg4[%c0_31, %c24], %90 {strides = array<i32>} : memref<16x32xf32, #tpu.memory_space<vmem>>, vector<8x8xf32>,
    %92 = vector.extract_strided_slice %6 {offsets = [1, 0], sizes = [1, 8], strides = [1, 1]} : vector<2x8xf32> to vector<1x8xf32>
    %93 = vector.extract_strided_slice %5 {offsets = [8, 0], sizes = [8, 8], strides = [1, 1]} : vector<16x96xf32> to vector<8x8xf32>
    %94 = vector.extract_strided_slice %5 {offsets = [8, 32], sizes = [8, 8], strides = [1, 1]} : vector<16x96xf32> to vector<8x8xf32>
    %95 = vector.extract_strided_slice %5 {offsets = [8, 64], sizes = [8, 8], strides = [1, 1]} : vector<16x96xf32> to vector<8x8xf32>
    %96 = tpu.transpose %94, [1, 0] : vector<8x8xf32> -> vector<8x8xf32>
    %cst_32 = arith.constant dense<0.000000e+00> : vector<8x8xf32>
    %97 = tpu.matmul %93, %96, %cst_32 {dimension_numbers = #tpu.dot_dimension_numbers<[1], [0], [0], [1], [0, 0, 1, 1], [], []>} : vector<8x8xf32>, vector<8x8xf32>, vector<8x8xf32> -> vector<8x8xf32>
    %cst_33 = arith.constant 0.353553385 : f32
    %98 = vector.broadcast %cst_33 : f32 to vector<8x8xf32>
    %99 = arith.mulf %97, %98 : vector<8x8xf32>
    %100 = vector.broadcast %92 : vector<1x8xf32> to vector<8x8xf32>
    %101 = arith.addf %99, %100 : vector<8x8xf32>
    %cst_34 = arith.constant dense<0xFF800000> : vector<8xf32>
    %102 = vector.multi_reduction <maximumf>, %101, %cst_34 [1] : vector<8x8xf32> to vector<8xf32>
    %103 = vector.shape_cast %102 : vector<8xf32> to vector<8x1xf32>
    %104 = vector.broadcast %103 : vector<8x1xf32> to vector<8x8xf32>
    %105 = arith.subf %101, %104 : vector<8x8xf32>
    %106 = math.exp %105 : vector<8x8xf32>
    %cst_35 = arith.constant dense<0.000000e+00> : vector<8xf32>
    %107 = vector.multi_reduction <add>, %106, %cst_35 [1] : vector<8x8xf32> to vector<8xf32>
    %108 = vector.shape_cast %107 : vector<8xf32> to vector<8x1xf32>
    %109 = tpu.reciprocal %108 {approx = true} : vector<8x1xf32> -> vector<8x1xf32>
    %110 = vector.broadcast %109 : vector<8x1xf32> to vector<8x8xf32>
    %111 = arith.mulf %106, %110 : vector<8x8xf32>
    %cst_36 = arith.constant dense<0.000000e+00> : vector<8x8xf32>
    %112 = tpu.matmul %111, %95, %cst_36 {dimension_numbers = #tpu.dot_dimension_numbers<[1], [0], [0], [1], [0, 0, 1, 1], [], []>} : vector<8x8xf32>, vector<8x8xf32>, vector<8x8xf32> -> vector<8x8xf32>
    %c8_37 = arith.constant 8 : index
    %c0_38 = arith.constant 0 : index
    %113 = vector.load %arg4[%c8_37, %c0_38] : memref<16x32xf32, #tpu.memory_space<vmem>>, vector<8x8xf32>
    tpu.vector_store %arg4[%c8_37, %c0_38], %112 {strides = array<i32>} : memref<16x32xf32, #tpu.memory_space<vmem>>, vector<8x8xf32>,
    %114 = vector.extract_strided_slice %5 {offsets = [8, 8], sizes = [8, 8], strides = [1, 1]} : vector<16x96xf32> to vector<8x8xf32>
    %115 = vector.extract_strided_slice %5 {offsets = [8, 40], sizes = [8, 8], strides = [1, 1]} : vector<16x96xf32> to vector<8x8xf32>
    %116 = vector.extract_strided_slice %5 {offsets = [8, 72], sizes = [8, 8], strides = [1, 1]} : vector<16x96xf32> to vector<8x8xf32>
    %117 = tpu.transpose %115, [1, 0] : vector<8x8xf32> -> vector<8x8xf32>
    %cst_39 = arith.constant dense<0.000000e+00> : vector<8x8xf32>
    %118 = tpu.matmul %114, %117, %cst_39 {dimension_numbers = #tpu.dot_dimension_numbers<[1], [0], [0], [1], [0, 0, 1, 1], [], []>} : vector<8x8xf32>, vector<8x8xf32>, vector<8x8xf32> -> vector<8x8xf32>
    %cst_40 = arith.constant 0.353553385 : f32
    %119 = vector.broadcast %cst_40 : f32 to vector<8x8xf32>
    %120 = arith.mulf %118, %119 : vector<8x8xf32>
    %121 = vector.broadcast %92 : vector<1x8xf32> to vector<8x8xf32>
    %122 = arith.addf %120, %121 : vector<8x8xf32>
    %cst_41 = arith.constant dense<0xFF800000> : vector<8xf32>
    %123 = vector.multi_reduction <maximumf>, %122, %cst_41 [1] : vector<8x8xf32> to vector<8xf32>
    %124 = vector.shape_cast %123 : vector<8xf32> to vector<8x1xf32>
    %125 = vector.broadcast %124 : vector<8x1xf32> to vector<8x8xf32>
    %126 = arith.subf %122, %125 : vector<8x8xf32>
    %127 = math.exp %126 : vector<8x8xf32>
    %cst_42 = arith.constant dense<0.000000e+00> : vector<8xf32>
    %128 = vector.multi_reduction <add>, %127, %cst_42 [1] : vector<8x8xf32> to vector<8xf32>
    %129 = vector.shape_cast %128 : vector<8xf32> to vector<8x1xf32>
    %130 = tpu.reciprocal %129 {approx = true} : vector<8x1xf32> -> vector<8x1xf32>
    %131 = vector.broadcast %130 : vector<8x1xf32> to vector<8x8xf32>
    %132 = arith.mulf %127, %131 : vector<8x8xf32>
    %cst_43 = arith.constant dense<0.000000e+00> : vector<8x8xf32>
    %133 = tpu.matmul %132, %116, %cst_43 {dimension_numbers = #tpu.dot_dimension_numbers<[1], [0], [0], [1], [0, 0, 1, 1], [], []>} : vector<8x8xf32>, vector<8x8xf32>, vector<8x8xf32> -> vector<8x8xf32>
    %c8_44 = arith.constant 8 : index
    %c8_45 = arith.constant 8 : index
    %134 = vector.load %arg4[%c8_44, %c8_45] : memref<16x32xf32, #tpu.memory_space<vmem>>, vector<8x8xf32>
    tpu.vector_store %arg4[%c8_44, %c8_45], %133 {strides = array<i32>} : memref<16x32xf32, #tpu.memory_space<vmem>>, vector<8x8xf32>,
    %135 = vector.extract_strided_slice %5 {offsets = [8, 16], sizes = [8, 8], strides = [1, 1]} : vector<16x96xf32> to vector<8x8xf32>
    %136 = vector.extract_strided_slice %5 {offsets = [8, 48], sizes = [8, 8], strides = [1, 1]} : vector<16x96xf32> to vector<8x8xf32>
    %137 = vector.extract_strided_slice %5 {offsets = [8, 80], sizes = [8, 8], strides = [1, 1]} : vector<16x96xf32> to vector<8x8xf32>
    %138 = tpu.transpose %136, [1, 0] : vector<8x8xf32> -> vector<8x8xf32>
    %cst_46 = arith.constant dense<0.000000e+00> : vector<8x8xf32>
    %139 = tpu.matmul %135, %138, %cst_46 {dimension_numbers = #tpu.dot_dimension_numbers<[1], [0], [0], [1], [0, 0, 1, 1], [], []>} : vector<8x8xf32>, vector<8x8xf32>, vector<8x8xf32> -> vector<8x8xf32>
    %cst_47 = arith.constant 0.353553385 : f32
    %140 = vector.broadcast %cst_47 : f32 to vector<8x8xf32>
    %141 = arith.mulf %139, %140 : vector<8x8xf32>
    %142 = vector.broadcast %92 : vector<1x8xf32> to vector<8x8xf32>
    %143 = arith.addf %141, %142 : vector<8x8xf32>
    %cst_48 = arith.constant dense<0xFF800000> : vector<8xf32>
    %144 = vector.multi_reduction <maximumf>, %143, %cst_48 [1] : vector<8x8xf32> to vector<8xf32>
    %145 = vector.shape_cast %144 : vector<8xf32> to vector<8x1xf32>
    %146 = vector.broadcast %145 : vector<8x1xf32> to vector<8x8xf32>
    %147 = arith.subf %143, %146 : vector<8x8xf32>
    %148 = math.exp %147 : vector<8x8xf32>
    %cst_49 = arith.constant dense<0.000000e+00> : vector<8xf32>
    %149 = vector.multi_reduction <add>, %148, %cst_49 [1] : vector<8x8xf32> to vector<8xf32>
    %150 = vector.shape_cast %149 : vector<8xf32> to vector<8x1xf32>
    %151 = tpu.reciprocal %150 {approx = true} : vector<8x1xf32> -> vector<8x1xf32>
    %152 = vector.broadcast %151 : vector<8x1xf32> to vector<8x8xf32>
    %153 = arith.mulf %148, %152 : vector<8x8xf32>
    %cst_50 = arith.constant dense<0.000000e+00> : vector<8x8xf32>
    %154 = tpu.matmul %153, %137, %cst_50 {dimension_numbers = #tpu.dot_dimension_numbers<[1], [0], [0], [1], [0, 0, 1, 1], [], []>} : vector<8x8xf32>, vector<8x8xf32>, vector<8x8xf32> -> vector<8x8xf32>
    %c8_51 = arith.constant 8 : index
    %c16_52 = arith.constant 16 : index
    %155 = vector.load %arg4[%c8_51, %c16_52] : memref<16x32xf32, #tpu.memory_space<vmem>>, vector<8x8xf32>
    tpu.vector_store %arg4[%c8_51, %c16_52], %154 {strides = array<i32>} : memref<16x32xf32, #tpu.memory_space<vmem>>, vector<8x8xf32>,
    %156 = vector.extract_strided_slice %5 {offsets = [8, 24], sizes = [8, 8], strides = [1, 1]} : vector<16x96xf32> to vector<8x8xf32>
    %157 = vector.extract_strided_slice %5 {offsets = [8, 56], sizes = [8, 8], strides = [1, 1]} : vector<16x96xf32> to vector<8x8xf32>
    %158 = vector.extract_strided_slice %5 {offsets = [8, 88], sizes = [8, 8], strides = [1, 1]} : vector<16x96xf32> to vector<8x8xf32>
    %159 = tpu.transpose %157, [1, 0] : vector<8x8xf32> -> vector<8x8xf32>
    %cst_53 = arith.constant dense<0.000000e+00> : vector<8x8xf32>
    %160 = tpu.matmul %156, %159, %cst_53 {dimension_numbers = #tpu.dot_dimension_numbers<[1], [0], [0], [1], [0, 0, 1, 1], [], []>} : vector<8x8xf32>, vector<8x8xf32>, vector<8x8xf32> -> vector<8x8xf32>
    %cst_54 = arith.constant 0.353553385 : f32
    %161 = vector.broadcast %cst_54 : f32 to vector<8x8xf32>
    %162 = arith.mulf %160, %161 : vector<8x8xf32>
    %163 = vector.broadcast %92 : vector<1x8xf32> to vector<8x8xf32>
    %164 = arith.addf %162, %163 : vector<8x8xf32>
    %cst_55 = arith.constant dense<0xFF800000> : vector<8xf32>
    %165 = vector.multi_reduction <maximumf>, %164, %cst_55 [1] : vector<8x8xf32> to vector<8xf32>
    %166 = vector.shape_cast %165 : vector<8xf32> to vector<8x1xf32>
    %167 = vector.broadcast %166 : vector<8x1xf32> to vector<8x8xf32>
    %168 = arith.subf %164, %167 : vector<8x8xf32>
    %169 = math.exp %168 : vector<8x8xf32>
    %cst_56 = arith.constant dense<0.000000e+00> : vector<8xf32>
    %170 = vector.multi_reduction <add>, %169, %cst_56 [1] : vector<8x8xf32> to vector<8xf32>
    %171 = vector.shape_cast %170 : vector<8xf32> to vector<8x1xf32>
    %172 = tpu.reciprocal %171 {approx = true} : vector<8x1xf32> -> vector<8x1xf32>
    %173 = vector.broadcast %172 : vector<8x1xf32> to vector<8x8xf32>
    %174 = arith.mulf %169, %173 : vector<8x8xf32>
    %cst_57 = arith.constant dense<0.000000e+00> : vector<8x8xf32>
    %175 = tpu.matmul %174, %158, %cst_57 {dimension_numbers = #tpu.dot_dimension_numbers<[1], [0], [0], [1], [0, 0, 1, 1], [], []>} : vector<8x8xf32>, vector<8x8xf32>, vector<8x8xf32> -> vector<8x8xf32>
    %c8_58 = arith.constant 8 : index
    %c24_59 = arith.constant 24 : index
    %176 = vector.load %arg4[%c8_58, %c24_59] : memref<16x32xf32, #tpu.memory_space<vmem>>, vector<8x8xf32>
    tpu.vector_store %arg4[%c8_58, %c24_59], %175 {strides = array<i32>} : memref<16x32xf32, #tpu.memory_space<vmem>>, vector<8x8xf32>,
    return
  }
}

</mosaic_0001>

<llo_original>
// kernel: tpu_custom_call.1
$region0: #{tpu_custom_call.1}
  #allocation0 [shape = 'u32[]', space=smem, size = 0x4, offset = 0x4, fixed_abs, tag = 'smem constant byte address 0x4 - core index']
  #allocation1 [shape = 'u32[72,128]{1,0:T(1,128)}', space=vmem, size = 0x9000, scoped, tag = 'internal scratch']
  %s0 = inlined_call_operand.hbm [shape: f32[16,32], index: 0, kind: input, shape index: {}]
  %s1 = inlined_call_operand.hbm [shape: f32[2,8], index: 1, kind: input, shape index: {}]
  %s2 = inlined_call_operand.hbm [shape: f32[32,96], index: 2, kind: input, shape index: {}]
  %s3 = inlined_call_operand.vmem [shape: f32[1,96], index: 3, kind: input, shape index: {}]
  %s4 = inlined_call_operand.hbm [shape: f32[16,32], index: 4, kind: output, shape index: {}]
  %s5 = sld [smem:[#allocation0]]
  $region38: #{tpu_custom_call.1} parent=0
    _
  %s7 = ssub.s32 1, %s5
  %s8 = scalar_select 0, %s7, %s5
  $region1: #{tpu_custom_call.1} parent=0
    #allocation2 [shape = 'u8[8192]{0}', space=vmem, size = 0x2000, scoped, tag = 'input window, operand 0, single buffered']
    #allocation3 [shape = 's32[1]{0}', space=sflag, size = 0x4, scoped, tag = 'scoped memory for tpu_custom_call.1']
    #allocation4 [shape = 's32[1]{0}', space=sflag, size = 0x4, scoped, tag = 'scoped memory for tpu_custom_call.1']
    #allocation5 [shape = 'u8[1024]{0}', space=vmem, size = 0x400, scoped, tag = 'input window, operand 1, single buffered']
    #allocation6 [shape = 's32[1]{0}', space=sflag, size = 0x4, scoped, tag = 'scoped memory for tpu_custom_call.1']
    #allocation7 [shape = 'u8[16384]{0}', space=vmem, size = 0x4000, scoped, tag = 'input window, operand 2, single buffered']
    #allocation8 [shape = 'u8[8192]{0}', space=vmem, size = 0x2000, scoped, tag = 'output window, operand 0, single buffered']
    %9 = vsyncpa [#allocation3], 0
    %10 = vsyncpa [#allocation6], 0
    %11 = vsyncpa [#allocation4], 0
    // Predicated region
    $region2: #{tpu_custom_call.1} parent=1 // pred_check
      _
    $region3: #{tpu_custom_call.1} parent=1 // pred_check_branch
      %13 = sbr.rel (0) target = $region5
    $region4: #{tpu_custom_call.1} parent=1 // pred_region
      %15 = vsyncadd [#allocation3], 0
      %s16 = sshll.u32 %s0, 4
      %s17 = int_to_ptr.hbm [resolvable:$true] %s16
      %s18 = sshll.u32 [#allocation2], 4
      %s19 = int_to_ptr.vmem [resolvable:$true] %s18
      %24 = dma.hbm_to_vmem [thread:$0]  %s17, 256, %s19, [#allocation3], 128, 128, 8
    $region5: #{tpu_custom_call.1} parent=1 // pred_fallthru
      _
    // Predicated region
    $region6: #{tpu_custom_call.1} parent=1 // pred_check
      _
    $region7: #{tpu_custom_call.1} parent=1 // pred_check_branch
      %26 = sbr.rel (0) target = $region9
    $region8: #{tpu_custom_call.1} parent=1 // pred_region
      %28 = vsyncadd [#allocation6], 0
      %s30 = sshll.u32 %s1, 4
      %s31 = int_to_ptr.hbm [resolvable:$true] %s30
      %s32 = sshll.u32 [#allocation5], 4
      %s33 = int_to_ptr.vmem [resolvable:$true] %s32
      %35 = dma.hbm_to_vmem [thread:$0]  %s31, 32, %s33, [#allocation6]
    $region9: #{tpu_custom_call.1} parent=1 // pred_fallthru
      _
    // Predicated region
    $region10: #{tpu_custom_call.1} parent=1 // pred_check
      _
    $region11: #{tpu_custom_call.1} parent=1 // pred_check_branch
      %37 = sbr.rel (0) target = $region13
    $region12: #{tpu_custom_call.1} parent=1 // pred_region
      %39 = vsyncadd [#allocation6], 0
      %s40 = sshll.u32 %s2, 4
      %s41 = int_to_ptr.hbm [resolvable:$true] %s40
      %s42 = sshll.u32 [#allocation7], 4
      %s43 = int_to_ptr.vmem [resolvable:$true] %s42
      %48 = dma.hbm_to_vmem [thread:$0]  %s41, 512, %s43, [#allocation6], 128, 128, 8
    $region13: #{tpu_custom_call.1} parent=1 // pred_fallthru
      _
    // Predicated region
    $region14: #{tpu_custom_call.1} parent=1 // pred_check
      _
    $region15: #{tpu_custom_call.1} parent=1 // pred_check_branch
      %50 = sbr.rel (0) target = $region17
    $region16: #{tpu_custom_call.1} parent=1 // pred_region
      _
    $region17: #{tpu_custom_call.1} parent=1 // pred_fallthru
      _
    // Predicated region
    $region18: #{tpu_custom_call.1} parent=1 // pred_check
      _
    $region19: #{tpu_custom_call.1} parent=1 // pred_check_branch
      %52 = sbr.rel (0) target = $region21
    $region20: #{tpu_custom_call.1} parent=1 // pred_region
      %54 = dma.done [#allocation3], 256
    $region21: #{tpu_custom_call.1} parent=1 // pred_fallthru
      _
    // Predicated region
    $region22: #{tpu_custom_call.1} parent=1 // pred_check
      _
    $region23: #{tpu_custom_call.1} parent=1 // pred_check_branch
      %56 = sbr.rel (0) target = $region25
    $region24: #{tpu_custom_call.1} parent=1 // pred_region
      %58 = dma.done [#allocation6], 32
    $region25: #{tpu_custom_call.1} parent=1 // pred_fallthru
      _
    // Predicated region
    $region26: #{tpu_custom_call.1} parent=1 // pred_check
      _
    $region27: #{tpu_custom_call.1} parent=1 // pred_check_branch
      %60 = sbr.rel (0) target = $region29
    $region28: #{tpu_custom_call.1} parent=1 // pred_region
      %62 = dma.done [#allocation6], 512
    $region29: #{tpu_custom_call.1} parent=1 // pred_fallthru
      _
    %v63 = vld [vmem:[#allocation2] sm:$0xff]
    %v64 = vld [vmem:[#allocation2 + $0x8] sm:$0xff]
    %v65 = vld [vmem:[#allocation7] sm:$0xff]
    %v66 = vld [vmem:[#allocation7 + $0x8] sm:$0xff]
    %v67 = vld [vmem:[#allocation7 + $0x10] sm:$0xff]
    %v68 = vld [vmem:[#allocation7 + $0x18] sm:$0xff]
    %v69 = vld [vmem:[%s3] sm:$0x1]
    %v71 = vperm.slane %v69, 0
    %vm73 = vcmask 261120
    %v75 = vsel %vm73, %v63, 0
    %v78 = vsel %vm73, %v64, 0
    %80 = vmatpush.msra.mxu0 0.0
    %81 = vmatpush.msra.mxu0 0.0
    %82 = vmatpush.msra.mxu0 0.0
    %83 = vmatpush.msra.mxu0 0.0
    %84 = vmatpush.msra.mxu0 0.0
    %85 = vmatpush.msra.mxu0 0.0
    %86 = vmatpush.msra.mxu0 0.0
    %87 = vmatpush.msra.mxu0 0.0
    %88 = vmatpush.msra.mxu0 0.0
    %89 = vmatpush.msra.mxu0 0.0
    %90 = vmatpush.msra.mxu0 0.0
    %91 = vmatpush.msra.mxu0 0.0
    %92 = vmatpush.msra.mxu0 %v68
    %93 = vmatpush.msra.mxu0 %v67
    %94 = vmatpush.msra.mxu0 %v66
    %95 = vmatpush.msra.mxu0 %v65
    %96 = vmatmul.f32.gmra.mxu0 %v75
    %v97 = vpop.f32.mrf.mxu0
    %v98 = vadd.f32 %v71, %v97
    %99 = vmatmul.f32.gmra.mxu0 %v78
    %v100 = vpop.f32.mrf.mxu0
    %v101 = vadd.f32 %v71, %v100
    %102 = vdwg.mxu0
    %v103 = vld [vmem:[#allocation5] sm:$0x3]
    %105 = vrot.lane.b32.xlu0 %v98, 96
    %v106 = vpop.permute.xlu0 %105
    %vm107 = vcmask 64512
    %v108 = vsel %vm107, %v98, 0
    %v110 = vsel %vm107, %v106, 0
    %112 = vmatpush.xpose.msra.mxu0 0.0
    %113 = vmatpush.xpose.msra.mxu0 0.0
    %114 = vmatpush.xpose.msra.mxu0 0.0
    %115 = vmatpush.xpose.msra.mxu0 0.0
    %116 = vmatpush.xpose.msra.mxu0 0.0
    %117 = vmatpush.xpose.msra.mxu0 0.0
    %118 = vmatpush.xpose.msra.mxu0 0.0
    %119 = vmatpush.xpose.msra.mxu0 0.0
    %120 = vmatpush.xpose.msra.mxu0 0.0
    %121 = vmatpush.xpose.msra.mxu0 0.0
    %122 = vmatpush.xpose.msra.mxu0 0.0
    %123 = vmatpush.xpose.msra.mxu0 0.0
    %124 = vmatpush.xpose.msra.mxu0 0.0
    %125 = vmatpush.xpose.msra.mxu0 0.0
    %126 = vmatpush.xpose.msra.mxu0 0.0
    %127 = vmatpush.xpose.msra.mxu0 %v110
    %128 = vmatmul.f32.gmra.mxu0 %v108
    %v129 = vpop.f32.mrf.mxu0
    %v130 = vadd.f32 0.0, %v129
    %131 = vdwg.mxu0
    %v132 = vmul.f32 %v130, 0.35355338
    %v133 = vperm.slane %v103, 0
    %v134 = vadd.f32 %v132, %v133
    %v135 = vsel %vm107, %v134, -inf
    %136 = vmax.xlane.f32.xlu0 %v135
    %v137 = vpop.xlane.xlu0 %136
    %v138 = vsub.f32 %v134, %v137
    %v139 = vmul.f32 %v138, 1.442695
    %v140 = vpow.pop %v139
    %v141 = vsel %vm107, %v140, 0.0
    %142 = vadd.xlane.f32.xlu0 %v141
    %v143 = vpop.xlane.xlu0 %142
    %v144 = vrcp.pop %v143
    %v145 = vmul.f32 %v140, %v144
    %146 = vrot.lane.b32.xlu0 %v98, 64
    %v147 = vpop.permute.xlu0 %146
    %v150 = vsel %vm107, %v145, 0
    %152 = vmatpush.msra.mxu0 0.0
    %153 = vmatpush.msra.mxu0 0.0
    %154 = vmatpush.msra.mxu0 0.0
    %155 = vmatpush.msra.mxu0 0.0
    %156 = vmatpush.msra.mxu0 0.0
    %157 = vmatpush.msra.mxu0 0.0
    %158 = vmatpush.msra.mxu0 0.0
    %159 = vmatpush.msra.mxu0 0.0
    %160 = vmatpush.msra.mxu0 0.0
    %161 = vmatpush.msra.mxu0 0.0
    %162 = vmatpush.msra.mxu0 0.0
    %163 = vmatpush.msra.mxu0 0.0
    %164 = vmatpush.msra.mxu0 0.0
    %165 = vmatpush.msra.mxu0 0.0
    %166 = vmatpush.msra.mxu0 0.0
    %167 = vmatpush.msra.mxu0 %v147
    %168 = vmatmul.f32.gmra.mxu0 %v150
    %v169 = vpop.f32.mrf.mxu0
    %v170 = vadd.f32 0.0, %v169
    %171 = vdwg.mxu0
    %172 = vst.msk [vmem:[#allocation8] sm:$0xff] %vm107, %v170
    %173 = vrot.lane.b32.xlu0 %v98, 120
    %v174 = vpop.permute.xlu0 %173
    %175 = vrot.lane.b32.xlu0 %v98, 88
    %v176 = vpop.permute.xlu0 %175
    %v177 = vsel %vm107, %v174, 0
    %v179 = vsel %vm107, %v176, 0
    %181 = vmatpush.xpose.msra.mxu0 0.0
    %182 = vmatpush.xpose.msra.mxu0 0.0
    %183 = vmatpush.xpose.msra.mxu0 0.0
    %184 = vmatpush.xpose.msra.mxu0 0.0
    %185 = vmatpush.xpose.msra.mxu0 0.0
    %186 = vmatpush.xpose.msra.mxu0 0.0
    %187 = vmatpush.xpose.msra.mxu0 0.0
    %188 = vmatpush.xpose.msra.mxu0 0.0
    %189 = vmatpush.xpose.msra.mxu0 0.0
    %190 = vmatpush.xpose.msra.mxu0 0.0
    %191 = vmatpush.xpose.msra.mxu0 0.0
    %192 = vmatpush.xpose.msra.mxu0 0.0
    %193 = vmatpush.xpose.msra.mxu0 0.0
    %194 = vmatpush.xpose.msra.mxu0 0.0
    %195 = vmatpush.xpose.msra.mxu0 0.0
    %196 = vmatpush.xpose.msra.mxu0 %v179
    %197 = vmatmul.f32.gmra.mxu0 %v177
    %v198 = vpop.f32.mrf.mxu0
    %v199 = vadd.f32 0.0, %v198
    %200 = vdwg.mxu0
    %v201 = vmul.f32 %v199, 0.35355338
    %v202 = vadd.f32 %v201, %v133
    %v203 = vsel %vm107, %v202, -inf
    %204 = vmax.xlane.f32.xlu0 %v203
    %v205 = vpop.xlane.xlu0 %204
    %v206 = vsub.f32 %v202, %v205
    %v207 = vmul.f32 %v206, 1.442695
    %v208 = vpow.pop %v207
    %v209 = vsel %vm107, %v208, 0.0
    %210 = vadd.xlane.f32.xlu0 %v209
    %v211 = vpop.xlane.xlu0 %210
    %v212 = vrcp.pop %v211
    %v213 = vmul.f32 %v208, %v212
    %214 = vrot.lane.b32.xlu0 %v98, 56
    %v215 = vpop.permute.xlu0 %214
    %v218 = vsel %vm107, %v213, 0
    %220 = vmatpush.msra.mxu0 0.0
    %221 = vmatpush.msra.mxu0 0.0
    %222 = vmatpush.msra.mxu0 0.0
    %223 = vmatpush.msra.mxu0 0.0
    %224 = vmatpush.msra.mxu0 0.0
    %225 = vmatpush.msra.mxu0 0.0
    %226 = vmatpush.msra.mxu0 0.0
    %227 = vmatpush.msra.mxu0 0.0
    %228 = vmatpush.msra.mxu0 0.0
    %229 = vmatpush.msra.mxu0 0.0
    %230 = vmatpush.msra.mxu0 0.0
    %231 = vmatpush.msra.mxu0 0.0
    %232 = vmatpush.msra.mxu0 0.0
    %233 = vmatpush.msra.mxu0 0.0
    %234 = vmatpush.msra.mxu0 0.0
    %235 = vmatpush.msra.mxu0 %v215
    %236 = vmatmul.f32.gmra.mxu0 %v218
    %v237 = vpop.f32.mrf.mxu0
    %v238 = vadd.f32 0.0, %v237
    %239 = vdwg.mxu0
    %241 = vrot.lane.b32.xlu0 %v238, 8
    %v242 = vpop.permute.xlu0 %241
    %vm244 = vcmask 130112
    %245 = vst.msk [vmem:[#allocation8] sm:$0xff] %vm244, %v242
    %246 = vrot.lane.b32.xlu0 %v98, 112
    %v247 = vpop.permute.xlu0 %246
    %248 = vrot.lane.b32.xlu0 %v98, 80
    %v249 = vpop.permute.xlu0 %248
    %v250 = vsel %vm107, %v247, 0
    %v252 = vsel %vm107, %v249, 0
    %254 = vmatpush.xpose.msra.mxu0 0.0
    %255 = vmatpush.xpose.msra.mxu0 0.0
    %256 = vmatpush.xpose.msra.mxu0 0.0
    %257 = vmatpush.xpose.msra.mxu0 0.0
    %258 = vmatpush.xpose.msra.mxu0 0.0
    %259 = vmatpush.xpose.msra.mxu0 0.0
    %260 = vmatpush.xpose.msra.mxu0 0.0
    %261 = vmatpush.xpose.msra.mxu0 0.0
    %262 = vmatpush.xpose.msra.mxu0 0.0
    %263 = vmatpush.xpose.msra.mxu0 0.0
    %264 = vmatpush.xpose.msra.mxu0 0.0
    %265 = vmatpush.xpose.msra.mxu0 0.0
    %266 = vmatpush.xpose.msra.mxu0 0.0
    %267 = vmatpush.xpose.msra.mxu0 0.0
    %268 = vmatpush.xpose.msra.mxu0 0.0
    %269 = vmatpush.xpose.msra.mxu0 %v252
    %270 = vmatmul.f32.gmra.mxu0 %v250
    %v271 = vpop.f32.mrf.mxu0
    %v272 = vadd.f32 0.0, %v271
    %273 = vdwg.mxu0
    %v274 = vmul.f32 %v272, 0.35355338
    %v275 = vadd.f32 %v274, %v133
    %v276 = vsel %vm107, %v275, -inf
    %277 = vmax.xlane.f32.xlu0 %v276
    %v278 = vpop.xlane.xlu0 %277
    %v279 = vsub.f32 %v275, %v278
    %v280 = vmul.f32 %v279, 1.442695
    %v281 = vpow.pop %v280
    %v282 = vsel %vm107, %v281, 0.0
    %283 = vadd.xlane.f32.xlu0 %v282
    %v284 = vpop.xlane.xlu0 %283
    %v285 = vrcp.pop %v284
    %v286 = vmul.f32 %v281, %v285
    %287 = vrot.lane.b32.xlu0 %v98, 48
    %v288 = vpop.permute.xlu0 %287
    %v291 = vsel %vm107, %v286, 0
    %293 = vmatpush.msra.mxu0 0.0
    %294 = vmatpush.msra.mxu0 0.0
    %295 = vmatpush.msra.mxu0 0.0
    %296 = vmatpush.msra.mxu0 0.0
    %297 = vmatpush.msra.mxu0 0.0
    %298 = vmatpush.msra.mxu0 0.0
    %299 = vmatpush.msra.mxu0 0.0
    %300 = vmatpush.msra.mxu0 0.0
    %301 = vmatpush.msra.mxu0 0.0
    %302 = vmatpush.msra.mxu0 0.0
    %303 = vmatpush.msra.mxu0 0.0
    %304 = vmatpush.msra.mxu0 0.0
    %305 = vmatpush.msra.mxu0 0.0
    %306 = vmatpush.msra.mxu0 0.0
    %307 = vmatpush.msra.mxu0 0.0
    %308 = vmatpush.msra.mxu0 %v288
    %309 = vmatmul.f32.gmra.mxu0 %v291
    %v310 = vpop.f32.mrf.mxu0
    %v311 = vadd.f32 0.0, %v310
    %312 = vdwg.mxu0
    %314 = vrot.lane.b32.xlu0 %v311, 16
    %v315 = vpop.permute.xlu0 %314
    %vm317 = vcmask 195712
    %318 = vst.msk [vmem:[#allocation8] sm:$0xff] %vm317, %v315
    %319 = vrot.lane.b32.xlu0 %v98, 104
    %v320 = vpop.permute.xlu0 %319
    %321 = vrot.lane.b32.xlu0 %v98, 72
    %v322 = vpop.permute.xlu0 %321
    %v323 = vsel %vm107, %v320, 0
    %v325 = vsel %vm107, %v322, 0
    %327 = vmatpush.xpose.msra.mxu0 0.0
    %328 = vmatpush.xpose.msra.mxu0 0.0
    %329 = vmatpush.xpose.msra.mxu0 0.0
    %330 = vmatpush.xpose.msra.mxu0 0.0
    %331 = vmatpush.xpose.msra.mxu0 0.0
    %332 = vmatpush.xpose.msra.mxu0 0.0
    %333 = vmatpush.xpose.msra.mxu0 0.0
    %334 = vmatpush.xpose.msra.mxu0 0.0
    %335 = vmatpush.xpose.msra.mxu0 0.0
    %336 = vmatpush.xpose.msra.mxu0 0.0
    %337 = vmatpush.xpose.msra.mxu0 0.0
    %338 = vmatpush.xpose.msra.mxu0 0.0
    %339 = vmatpush.xpose.msra.mxu0 0.0
    %340 = vmatpush.xpose.msra.mxu0 0.0
    %341 = vmatpush.xpose.msra.mxu0 0.0
    %342 = vmatpush.xpose.msra.mxu0 %v325
    %343 = vmatmul.f32.gmra.mxu0 %v323
    %v344 = vpop.f32.mrf.mxu0
    %v345 = vadd.f32 0.0, %v344
    %346 = vdwg.mxu0
    %v347 = vmul.f32 %v345, 0.35355338
    %v348 = vadd.f32 %v347, %v133
    %v349 = vsel %vm107, %v348, -inf
    %350 = vmax.xlane.f32.xlu0 %v349
    %v351 = vpop.xlane.xlu0 %350
    %v352 = vsub.f32 %v348, %v351
    %v353 = vmul.f32 %v352, 1.442695
    %v354 = vpow.pop %v353
    %v355 = vsel %vm107, %v354, 0.0
    %356 = vadd.xlane.f32.xlu0 %v355
    %v357 = vpop.xlane.xlu0 %356
    %v358 = vrcp.pop %v357
    %v359 = vmul.f32 %v354, %v358
    %360 = vrot.lane.b32.xlu0 %v98, 40
    %v361 = vpop.permute.xlu0 %360
    %v364 = vsel %vm107, %v359, 0
    %366 = vmatpush.msra.mxu0 0.0
    %367 = vmatpush.msra.mxu0 0.0
    %368 = vmatpush.msra.mxu0 0.0
    %369 = vmatpush.msra.mxu0 0.0
    %370 = vmatpush.msra.mxu0 0.0
    %371 = vmatpush.msra.mxu0 0.0
    %372 = vmatpush.msra.mxu0 0.0
    %373 = vmatpush.msra.mxu0 0.0
    %374 = vmatpush.msra.mxu0 0.0
    %375 = vmatpush.msra.mxu0 0.0
    %376 = vmatpush.msra.mxu0 0.0
    %377 = vmatpush.msra.mxu0 0.0
    %378 = vmatpush.msra.mxu0 0.0
    %379 = vmatpush.msra.mxu0 0.0
    %380 = vmatpush.msra.mxu0 0.0
    %381 = vmatpush.msra.mxu0 %v361
    %382 = vmatmul.f32.gmra.mxu0 %v364
    %v383 = vpop.f32.mrf.mxu0
    %v384 = vadd.f32 0.0, %v383
    %385 = vdwg.mxu0
    %387 = vrot.lane.b32.xlu0 %v384, 24
    %v388 = vpop.permute.xlu0 %387
    %vm390 = vcmask 261312
    %391 = vst.msk [vmem:[#allocation8] sm:$0xff] %vm390, %v388
    %393 = vrot.lane.b32.xlu0 %v101, 96
    %v394 = vpop.permute.xlu0 %393
    %v395 = vsel %vm107, %v101, 0
    %v397 = vsel %vm107, %v394, 0
    %399 = vmatpush.xpose.msra.mxu0 0.0
    %400 = vmatpush.xpose.msra.mxu0 0.0
    %401 = vmatpush.xpose.msra.mxu0 0.0
    %402 = vmatpush.xpose.msra.mxu0 0.0
    %403 = vmatpush.xpose.msra.mxu0 0.0
    %404 = vmatpush.xpose.msra.mxu0 0.0
    %405 = vmatpush.xpose.msra.mxu0 0.0
    %406 = vmatpush.xpose.msra.mxu0 0.0
    %407 = vmatpush.xpose.msra.mxu0 0.0
    %408 = vmatpush.xpose.msra.mxu0 0.0
    %409 = vmatpush.xpose.msra.mxu0 0.0
    %410 = vmatpush.xpose.msra.mxu0 0.0
    %411 = vmatpush.xpose.msra.mxu0 0.0
    %412 = vmatpush.xpose.msra.mxu0 0.0
    %413 = vmatpush.xpose.msra.mxu0 0.0
    %414 = vmatpush.xpose.msra.mxu0 %v397
    %415 = vmatmul.f32.gmra.mxu0 %v395
    %v416 = vpop.f32.mrf.mxu0
    %v417 = vadd.f32 0.0, %v416
    %418 = vdwg.mxu0
    %v419 = vmul.f32 %v417, 0.35355338
    %v420 = vperm.slane %v103, 1
    %v421 = vadd.f32 %v419, %v420
    %v422 = vsel %vm107, %v421, -inf
    %423 = vmax.xlane.f32.xlu0 %v422
    %v424 = vpop.xlane.xlu0 %423
    %v425 = vsub.f32 %v421, %v424
    %v426 = vmul.f32 %v425, 1.442695
    %v427 = vpow.pop %v426
    %v428 = vsel %vm107, %v427, 0.0
    %429 = vadd.xlane.f32.xlu0 %v428
    %v430 = vpop.xlane.xlu0 %429
    %v431 = vrcp.pop %v430
    %v432 = vmul.f32 %v427, %v431
    %433 = vrot.lane.b32.xlu0 %v101, 64
    %v434 = vpop.permute.xlu0 %433
    %v437 = vsel %vm107, %v432, 0
    %439 = vmatpush.msra.mxu0 0.0
    %440 = vmatpush.msra.mxu0 0.0
    %441 = vmatpush.msra.mxu0 0.0
    %442 = vmatpush.msra.mxu0 0.0
    %443 = vmatpush.msra.mxu0 0.0
    %444 = vmatpush.msra.mxu0 0.0
    %445 = vmatpush.msra.mxu0 0.0
    %446 = vmatpush.msra.mxu0 0.0
    %447 = vmatpush.msra.mxu0 0.0
    %448 = vmatpush.msra.mxu0 0.0
    %449 = vmatpush.msra.mxu0 0.0
    %450 = vmatpush.msra.mxu0 0.0
    %451 = vmatpush.msra.mxu0 0.0
    %452 = vmatpush.msra.mxu0 0.0
    %453 = vmatpush.msra.mxu0 0.0
    %454 = vmatpush.msra.mxu0 %v434
    %455 = vmatmul.f32.gmra.mxu0 %v437
    %v456 = vpop.f32.mrf.mxu0
    %v457 = vadd.f32 0.0, %v456
    %458 = vdwg.mxu0
    %459 = vst.msk [vmem:[#allocation8 + $0x8] sm:$0xff] %vm107, %v457
    %460 = vrot.lane.b32.xlu0 %v101, 120
    %v461 = vpop.permute.xlu0 %460
    %462 = vrot.lane.b32.xlu0 %v101, 88
    %v463 = vpop.permute.xlu0 %462
    %v464 = vsel %vm107, %v461, 0
    %v466 = vsel %vm107, %v463, 0
    %468 = vmatpush.xpose.msra.mxu0 0.0
    %469 = vmatpush.xpose.msra.mxu0 0.0
    %470 = vmatpush.xpose.msra.mxu0 0.0
    %471 = vmatpush.xpose.msra.mxu0 0.0
    %472 = vmatpush.xpose.msra.mxu0 0.0
    %473 = vmatpush.xpose.msra.mxu0 0.0
    %474 = vmatpush.xpose.msra.mxu0 0.0
    %475 = vmatpush.xpose.msra.mxu0 0.0
    %476 = vmatpush.xpose.msra.mxu0 0.0
    %477 = vmatpush.xpose.msra.mxu0 0.0
    %478 = vmatpush.xpose.msra.mxu0 0.0
    %479 = vmatpush.xpose.msra.mxu0 0.0
    %480 = vmatpush.xpose.msra.mxu0 0.0
    %481 = vmatpush.xpose.msra.mxu0 0.0
    %482 = vmatpush.xpose.msra.mxu0 0.0
    %483 = vmatpush.xpose.msra.mxu0 %v466
    %484 = vmatmul.f32.gmra.mxu0 %v464
    %v485 = vpop.f32.mrf.mxu0
    %v486 = vadd.f32 0.0, %v485
    %487 = vdwg.mxu0
    %v488 = vmul.f32 %v486, 0.35355338
    %v489 = vadd.f32 %v488, %v420
    %v490 = vsel %vm107, %v489, -inf
    %491 = vmax.xlane.f32.xlu0 %v490
    %v492 = vpop.xlane.xlu0 %491
    %v493 = vsub.f32 %v489, %v492
    %v494 = vmul.f32 %v493, 1.442695
    %v495 = vpow.pop %v494
    %v496 = vsel %vm107, %v495, 0.0
    %497 = vadd.xlane.f32.xlu0 %v496
    %v498 = vpop.xlane.xlu0 %497
    %v499 = vrcp.pop %v498
    %v500 = vmul.f32 %v495, %v499
    %501 = vrot.lane.b32.xlu0 %v101, 56
    %v502 = vpop.permute.xlu0 %501
    %v505 = vsel %vm107, %v500, 0
    %507 = vmatpush.msra.mxu0 0.0
    %508 = vmatpush.msra.mxu0 0.0
    %509 = vmatpush.msra.mxu0 0.0
    %510 = vmatpush.msra.mxu0 0.0
    %511 = vmatpush.msra.mxu0 0.0
    %512 = vmatpush.msra.mxu0 0.0
    %513 = vmatpush.msra.mxu0 0.0
    %514 = vmatpush.msra.mxu0 0.0
    %515 = vmatpush.msra.mxu0 0.0
    %516 = vmatpush.msra.mxu0 0.0
    %517 = vmatpush.msra.mxu0 0.0
    %518 = vmatpush.msra.mxu0 0.0
    %519 = vmatpush.msra.mxu0 0.0
    %520 = vmatpush.msra.mxu0 0.0
    %521 = vmatpush.msra.mxu0 0.0
    %522 = vmatpush.msra.mxu0 %v502
    %523 = vmatmul.f32.gmra.mxu0 %v505
    %v524 = vpop.f32.mrf.mxu0
    %v525 = vadd.f32 0.0, %v524
    %526 = vdwg.mxu0
    %528 = vrot.lane.b32.xlu0 %v525, 8
    %v529 = vpop.permute.xlu0 %528
    %531 = vst.msk [vmem:[#allocation8 + $0x8] sm:$0xff] %vm244, %v529
    %532 = vrot.lane.b32.xlu0 %v101, 112
    %v533 = vpop.permute.xlu0 %532
    %534 = vrot.lane.b32.xlu0 %v101, 80
    %v535 = vpop.permute.xlu0 %534
    %v536 = vsel %vm107, %v533, 0
    %v538 = vsel %vm107, %v535, 0
    %540 = vmatpush.xpose.msra.mxu0 0.0
    %541 = vmatpush.xpose.msra.mxu0 0.0
    %542 = vmatpush.xpose.msra.mxu0 0.0
    %543 = vmatpush.xpose.msra.mxu0 0.0
    %544 = vmatpush.xpose.msra.mxu0 0.0
    %545 = vmatpush.xpose.msra.mxu0 0.0
    %546 = vmatpush.xpose.msra.mxu0 0.0
    %547 = vmatpush.xpose.msra.mxu0 0.0
    %548 = vmatpush.xpose.msra.mxu0 0.0
    %549 = vmatpush.xpose.msra.mxu0 0.0
    %550 = vmatpush.xpose.msra.mxu0 0.0
    %551 = vmatpush.xpose.msra.mxu0 0.0
    %552 = vmatpush.xpose.msra.mxu0 0.0
    %553 = vmatpush.xpose.msra.mxu0 0.0
    %554 = vmatpush.xpose.msra.mxu0 0.0
    %555 = vmatpush.xpose.msra.mxu0 %v538
    %556 = vmatmul.f32.gmra.mxu0 %v536
    %v557 = vpop.f32.mrf.mxu0
    %v558 = vadd.f32 0.0, %v557
    %559 = vdwg.mxu0
    %v560 = vmul.f32 %v558, 0.35355338
    %v561 = vadd.f32 %v560, %v420
    %v562 = vsel %vm107, %v561, -inf
    %563 = vmax.xlane.f32.xlu0 %v562
    %v564 = vpop.xlane.xlu0 %563
    %v565 = vsub.f32 %v561, %v564
    %v566 = vmul.f32 %v565, 1.442695
    %v567 = vpow.pop %v566
    %v568 = vsel %vm107, %v567, 0.0
    %569 = vadd.xlane.f32.xlu0 %v568
    %v570 = vpop.xlane.xlu0 %569
    %v571 = vrcp.pop %v570
    %v572 = vmul.f32 %v567, %v571
    %573 = vrot.lane.b32.xlu0 %v101, 48
    %v574 = vpop.permute.xlu0 %573
    %v577 = vsel %vm107, %v572, 0
    %579 = vmatpush.msra.mxu0 0.0
    %580 = vmatpush.msra.mxu0 0.0
    %581 = vmatpush.msra.mxu0 0.0
    %582 = vmatpush.msra.mxu0 0.0
    %583 = vmatpush.msra.mxu0 0.0
    %584 = vmatpush.msra.mxu0 0.0
    %585 = vmatpush.msra.mxu0 0.0
    %586 = vmatpush.msra.mxu0 0.0
    %587 = vmatpush.msra.mxu0 0.0
    %588 = vmatpush.msra.mxu0 0.0
    %589 = vmatpush.msra.mxu0 0.0
    %590 = vmatpush.msra.mxu0 0.0
    %591 = vmatpush.msra.mxu0 0.0
    %592 = vmatpush.msra.mxu0 0.0
    %593 = vmatpush.msra.mxu0 0.0
    %594 = vmatpush.msra.mxu0 %v574
    %595 = vmatmul.f32.gmra.mxu0 %v577
    %v596 = vpop.f32.mrf.mxu0
    %v597 = vadd.f32 0.0, %v596
    %598 = vdwg.mxu0
    %600 = vrot.lane.b32.xlu0 %v597, 16
    %v601 = vpop.permute.xlu0 %600
    %603 = vst.msk [vmem:[#allocation8 + $0x8] sm:$0xff] %vm317, %v601
    %604 = vrot.lane.b32.xlu0 %v101, 104
    %v605 = vpop.permute.xlu0 %604
    %606 = vrot.lane.b32.xlu0 %v101, 72
    %v607 = vpop.permute.xlu0 %606
    %v608 = vsel %vm107, %v605, 0
    %v610 = vsel %vm107, %v607, 0
    %612 = vmatpush.xpose.msra.mxu0 0.0
    %613 = vmatpush.xpose.msra.mxu0 0.0
    %614 = vmatpush.xpose.msra.mxu0 0.0
    %615 = vmatpush.xpose.msra.mxu0 0.0
    %616 = vmatpush.xpose.msra.mxu0 0.0
    %617 = vmatpush.xpose.msra.mxu0 0.0
    %618 = vmatpush.xpose.msra.mxu0 0.0
    %619 = vmatpush.xpose.msra.mxu0 0.0
    %620 = vmatpush.xpose.msra.mxu0 0.0
    %621 = vmatpush.xpose.msra.mxu0 0.0
    %622 = vmatpush.xpose.msra.mxu0 0.0
    %623 = vmatpush.xpose.msra.mxu0 0.0
    %624 = vmatpush.xpose.msra.mxu0 0.0
    %625 = vmatpush.xpose.msra.mxu0 0.0
    %626 = vmatpush.xpose.msra.mxu0 0.0
    %627 = vmatpush.xpose.msra.mxu0 %v610
    %628 = vmatmul.f32.gmra.mxu0 %v608
    %v629 = vpop.f32.mrf.mxu0
    %v630 = vadd.f32 0.0, %v629
    %631 = vdwg.mxu0
    %v632 = vmul.f32 %v630, 0.35355338
    %v633 = vadd.f32 %v632, %v420
    %v634 = vsel %vm107, %v633, -inf
    %635 = vmax.xlane.f32.xlu0 %v634
    %v636 = vpop.xlane.xlu0 %635
    %v637 = vsub.f32 %v633, %v636
    %v638 = vmul.f32 %v637, 1.442695
    %v639 = vpow.pop %v638
    %v640 = vsel %vm107, %v639, 0.0
    %641 = vadd.xlane.f32.xlu0 %v640
    %v642 = vpop.xlane.xlu0 %641
    %v643 = vrcp.pop %v642
    %v644 = vmul.f32 %v639, %v643
    %645 = vrot.lane.b32.xlu0 %v101, 40
    %v646 = vpop.permute.xlu0 %645
    %v649 = vsel %vm107, %v644, 0
    %651 = vmatpush.msra.mxu0 0.0
    %652 = vmatpush.msra.mxu0 0.0
    %653 = vmatpush.msra.mxu0 0.0
    %654 = vmatpush.msra.mxu0 0.0
    %655 = vmatpush.msra.mxu0 0.0
    %656 = vmatpush.msra.mxu0 0.0
    %657 = vmatpush.msra.mxu0 0.0
    %658 = vmatpush.msra.mxu0 0.0
    %659 = vmatpush.msra.mxu0 0.0
    %660 = vmatpush.msra.mxu0 0.0
    %661 = vmatpush.msra.mxu0 0.0
    %662 = vmatpush.msra.mxu0 0.0
    %663 = vmatpush.msra.mxu0 0.0
    %664 = vmatpush.msra.mxu0 0.0
    %665 = vmatpush.msra.mxu0 0.0
    %666 = vmatpush.msra.mxu0 %v646
    %667 = vmatmul.f32.gmra.mxu0 %v649
    %v668 = vpop.f32.mrf.mxu0
    %v669 = vadd.f32 0.0, %v668
    %670 = vdwg.mxu0
    %672 = vrot.lane.b32.xlu0 %v669, 24
    %v673 = vpop.permute.xlu0 %672
    %675 = vst.msk [vmem:[#allocation8 + $0x8] sm:$0xff] %vm390, %v673
    // Predicated region
    $region30: #{tpu_custom_call.1} parent=1 // pred_check
      _
    $region31: #{tpu_custom_call.1} parent=1 // pred_check_branch
      %677 = sbr.rel (0) target = $region33
    $region32: #{tpu_custom_call.1} parent=1 // pred_region
      %679 = vsyncadd [#allocation4], 0
      %s680 = sshll.u32 [#allocation8], 4
      %s681 = int_to_ptr.vmem [resolvable:$true] %s680
      %s682 = sshll.u32 %s4, 4
      %s683 = int_to_ptr.hbm [resolvable:$true] %s682
      %688 = dma.vmem_to_hbm [thread:$0]  %s681, 256, %s683, [#allocation4], 128, 128, 8
    $region33: #{tpu_custom_call.1} parent=1 // pred_fallthru
      _
    // Predicated region
    $region34: #{tpu_custom_call.1} parent=1 // pred_check
      _
    $region35: #{tpu_custom_call.1} parent=1 // pred_check_branch
      %690 = sbr.rel (0) target = $region37
    $region36: #{tpu_custom_call.1} parent=1 // pred_region
      %692 = dma.done [#allocation4], 256
    $region37: #{tpu_custom_call.1} parent=1 // pred_fallthru
      _
    %693 = vsyncpa [#allocation3], 1
    %694 = vsyncpa [#allocation6], 1
    %695 = vsyncpa [#allocation4], 1

</llo_original>
